<compile_context>
chip_gen: v5e
topology: v5e:2x2
jax: 0.10.0
libtpu: 0.0.40
codegen_flags: <defaults>
</compile_context>

<pallas_src>
import functools

import jax
import jax.numpy as jnp
from jax.experimental import pallas as pl
from jax.experimental.pallas import tpu as pltpu

_COS_EPS = 1e-8  # matches torch.nn.CosineSimilarity default eps


def _pick_block_rows(B, C, max_tile_bytes=2 << 20):
    """Largest multiple-of-8 divisor of B whose (Bt, C) f32 tile fits the cap."""
    best = None
    for bt in range(8, B + 1, 8):
        if B % bt == 0 and bt * C * 4 <= max_tile_bytes:
            best = bt
    return best if best is not None else B  # full-extent block is always legal


def _hybrid_loss_kernel(pred_ref, true_ref, w_ref, out_ref, *, inv_b, inv_bc):
    @pl.when(pl.program_id(0) == 0)
    def _():
        out_ref[...] = jnp.zeros_like(out_ref)

    p = pred_ref[...]                 # (Bt, C) f32
    t = true_ref[...]                 # (Bt, C) f32
    w = w_ref[...]                    # (1,  C) f32 combined idf weights

    # --- list-wise rank-cosine term: sum_i 2*(1 - cos_i) / B -----------------
    dot_pt = jnp.sum(p * t, axis=-1, keepdims=True)            # (Bt, 1)
    nrm_p = jnp.sqrt(jnp.sum(p * p, axis=-1, keepdims=True))   # (Bt, 1)
    nrm_t = jnp.sqrt(jnp.sum(t * t, axis=-1, keepdims=True))   # (Bt, 1)
    cos = dot_pt / jnp.maximum(nrm_p * nrm_t, _COS_EPS)
    cos_part = jnp.sum((1.0 - cos) * (2.0 * inv_b), axis=0, keepdims=True)  # (1,1)

    # --- idf-weighted MSE term: sum_ij (p-t)^2 * w_j / (B*C) -----------------
    diff = p - t
    se_row = jnp.sum(diff * diff * w, axis=-1, keepdims=True)   # (Bt, 1)
    se_part = jnp.sum(se_row, axis=0, keepdims=True) * inv_bc   # (1, 1)

    out_ref[...] += cos_part + se_part


def hybrid_cosine_mse_trainweighted_idf(pred, true, top_counts, bot_counts, N,
                                        *, block_rows=None):
    pred = pred.astype(jnp.float32)
    true = true.astype(jnp.float32)
    B, C = pred.shape

    # idf coefficients (length C).  Combined once since the mean is linear.
    top_coef = jnp.log(N / (top_counts.astype(jnp.float32) + 1.0))
    bot_coef = jnp.log(N / (bot_counts.astype(jnp.float32) + 1.0))
    w = (0.5 * (top_coef + bot_coef)).reshape(1, C)

    bt = block_rows if block_rows is not None else _pick_block_rows(B, C)
    assert B % bt == 0 and (bt % 8 == 0 or bt == B), (B, bt)
    grid = (B // bt,)

    kernel = functools.partial(
        _hybrid_loss_kernel, inv_b=1.0 / B, inv_bc=1.0 / (B * C))

    out = pl.pallas_call(
        kernel,
        out_shape=jax.ShapeDtypeStruct((1, 1), jnp.float32),
        grid=grid,
        in_specs=[
            pl.BlockSpec((bt, C), lambda i: (i, 0)),
            pl.BlockSpec((bt, C), lambda i: (i, 0)),
            pl.BlockSpec((1, C), lambda i: (0, 0)),     # resident weight row
        ],
        out_specs=pl.BlockSpec((1, 1), lambda i: (0, 0)),  # resident accumulator
        compiler_params=pltpu.CompilerParams(
            dimension_semantics=("arbitrary",)),  # reduction axis into scalar
    )(pred, true, w)
    return out[0, 0]


if __name__ == "__main__":
    key = jax.random.PRNGKey(0)
    k1, k2, k3, k4 = jax.random.split(key, 4)
    B, C = 64, 128
    pred = jax.random.normal(k1, (B, C), dtype=jnp.float32)
    true = jax.random.normal(k2, (B, C), dtype=jnp.float32)
    # train_stats: per-feature document counts ('top'/'bot') and corpus size N
    top_counts = jax.random.randint(k3, (C,), 0, 100).astype(jnp.float32)
    bot_counts = jax.random.randint(k4, (C,), 0, 100).astype(jnp.float32)
    N = 1000.0

    loss = hybrid_cosine_mse_trainweighted_idf(
        pred, true, top_counts, bot_counts, N, block_rows=16)  # grid of 4 tiles
    jax.block_until_ready(loss)

    # pure-JAX reference mirroring the PyTorch forward exactly
    cos = jnp.sum(pred * true, axis=1) / jnp.maximum(
        jnp.sqrt(jnp.sum(pred * pred, axis=1))
        * jnp.sqrt(jnp.sum(true * true, axis=1)),
        _COS_EPS)
    loss1 = jnp.mean((1.0 - cos) / 0.5)
    top_coef = jnp.log(N / (top_counts + 1.0))
    bot_coef = jnp.log(N / (bot_counts + 1.0))
    se = (pred - true) ** 2
    loss2 = (jnp.mean(se * top_coef) + jnp.mean(se * bot_coef)) / 2.0
    ref = loss1 + loss2

    assert jnp.allclose(loss, ref, rtol=1e-5, atol=1e-5), (loss, ref)
    print("KERNEL_OK")
</pallas_src>

<mosaic_0001>
module attributes {stable_mosaic.version = 11 : i64} {
  func.func @_hybrid_loss_kernel(%arg0: i32, %arg1: memref<16x128xf32, #tpu.memory_space<vmem>>, %arg2: memref<16x128xf32, #tpu.memory_space<vmem>>, %arg3: memref<1x128xf32, #tpu.memory_space<vmem>>, %arg4: memref<1x1xf32, #tpu.memory_space<vmem>>) attributes {dimension_semantics = [#tpu.dimension_semantics<arbitrary>], iteration_bounds = array<i64: 4>, scalar_prefetch = 0 : i64, scratch_operands = 0 : i64, tpu.core_type = #tpu.core_type<tc>, window_params = [{transform_indices = @transform_0, window_bounds = array<i64: 16, 128>}, {transform_indices = @transform_1, window_bounds = array<i64: 16, 128>}, {pipeline_mode = #tpu.pipeline_mode<synchronous>, transform_indices = @transform_2, window_bounds = array<i64: 1, 128>}, {pipeline_mode = #tpu.pipeline_mode<synchronous>, transform_indices = @transform_3, window_bounds = array<i64: 1, 1>}]} {
    %c0_i32 = arith.constant 0 : i32
    %0 = arith.cmpi eq, %arg0, %c0_i32 : i32
    %1 = arith.extui %0 : i1 to i32
    %c0_i32_0 = arith.constant 0 : i32
    %2 = arith.cmpi ne, %1, %c0_i32_0 : i32
    scf.if %2 {
      %cst_19 = arith.constant 0.000000e+00 : f32
      %41 = vector.broadcast %cst_19 : f32 to vector<1x1xf32>
      %c0_20 = arith.constant 0 : index
      %c0_21 = arith.constant 0 : index
      %42 = vector.load %arg4[%c0_20, %c0_21] : memref<1x1xf32, #tpu.memory_space<vmem>>, vector<1x1xf32>
      tpu.vector_store %arg4[%c0_20, %c0_21], %41 {strides = array<i32>} : memref<1x1xf32, #tpu.memory_space<vmem>>, vector<1x1xf32>,
    } else {
    }
    %c0 = arith.constant 0 : index
    %c0_1 = arith.constant 0 : index
    %3 = vector.load %arg1[%c0, %c0_1] : memref<16x128xf32, #tpu.memory_space<vmem>>, vector<16x128xf32>
    %c0_2 = arith.constant 0 : index
    %c0_3 = arith.constant 0 : index
    %4 = vector.load %arg2[%c0_2, %c0_3] : memref<16x128xf32, #tpu.memory_space<vmem>>, vector<16x128xf32>
    %c0_4 = arith.constant 0 : index
    %c0_5 = arith.constant 0 : index
    %5 = vector.load %arg3[%c0_4, %c0_5] : memref<1x128xf32, #tpu.memory_space<vmem>>, vector<1x128xf32>
    %6 = arith.mulf %3, %4 : vector<16x128xf32>
    %cst = arith.constant dense<0.000000e+00> : vector<16xf32>
    %7 = vector.multi_reduction <add>, %6, %cst [1] : vector<16x128xf32> to vector<16xf32>
    %8 = vector.shape_cast %7 : vector<16xf32> to vector<16x1xf32>
    %9 = arith.mulf %3, %3 : vector<16x128xf32>
    %cst_6 = arith.constant dense<0.000000e+00> : vector<16xf32>
    %10 = vector.multi_reduction <add>, %9, %cst_6 [1] : vector<16x128xf32> to vector<16xf32>
    %11 = vector.shape_cast %10 : vector<16xf32> to vector<16x1xf32>
    %12 = math.sqrt %11 : vector<16x1xf32>
    %13 = arith.mulf %4, %4 : vector<16x128xf32>
    %cst_7 = arith.constant dense<0.000000e+00> : vector<16xf32>
    %14 = vector.multi_reduction <add>, %13, %cst_7 [1] : vector<16x128xf32> to vector<16xf32>
    %15 = vector.shape_cast %14 : vector<16xf32> to vector<16x1xf32>
    %16 = math.sqrt %15 : vector<16x1xf32>
    %17 = arith.mulf %12, %16 : vector<16x1xf32>
    %cst_8 = arith.constant 9.99999993E-9 : f32
    %18 = vector.broadcast %cst_8 : f32 to vector<16x1xf32>
    %19 = arith.maximumf %17, %18 : vector<16x1xf32>
    %20 = arith.divf %8, %19 : vector<16x1xf32>
    %cst_9 = arith.constant 1.000000e+00 : f32
    %21 = vector.broadcast %cst_9 : f32 to vector<16x1xf32>
    %22 = arith.subf %21, %20 : vector<16x1xf32>
    %cst_10 = arith.constant 3.125000e-02 : f32
    %23 = vector.broadcast %cst_10 : f32 to vector<16x1xf32>
    %24 = arith.mulf %22, %23 : vector<16x1xf32>
    %cst_11 = arith.constant dense<0.000000e+00> : vector<1xf32>
    %25 = vector.multi_reduction <add>, %24, %cst_11 [0] : vector<16x1xf32> to vector<1xf32>
    %26 = vector.shape_cast %25 : vector<1xf32> to vector<1x1xf32>
    %27 = arith.subf %3, %4 : vector<16x128xf32>
    %28 = arith.mulf %27, %27 : vector<16x128xf32>
    %29 = vector.broadcast %5 : vector<1x128xf32> to vector<16x128xf32>
    %30 = arith.mulf %28, %29 : vector<16x128xf32>
    %cst_12 = arith.constant dense<0.000000e+00> : vector<16xf32>
    %31 = vector.multi_reduction <add>, %30, %cst_12 [1] : vector<16x128xf32> to vector<16xf32>
    %32 = vector.shape_cast %31 : vector<16xf32> to vector<16x1xf32>
    %cst_13 = arith.constant dense<0.000000e+00> : vector<1xf32>
    %33 = vector.multi_reduction <add>, %32, %cst_13 [0] : vector<16x1xf32> to vector<1xf32>
    %34 = vector.shape_cast %33 : vector<1xf32> to vector<1x1xf32>
    %cst_14 = arith.constant 1.22070313E-4 : f32
    %35 = vector.broadcast %cst_14 : f32 to vector<1x1xf32>
    %36 = arith.mulf %34, %35 : vector<1x1xf32>
    %c0_15 = arith.constant 0 : index
    %c0_16 = arith.constant 0 : index
    %37 = vector.load %arg4[%c0_15, %c0_16] : memref<1x1xf32, #tpu.memory_space<vmem>>, vector<1x1xf32>
    %38 = arith.addf %26, %36 : vector<1x1xf32>
    %39 = arith.addf %37, %38 : vector<1x1xf32>
    %c0_17 = arith.constant 0 : index
    %c0_18 = arith.constant 0 : index
    %40 = vector.load %arg4[%c0_17, %c0_18] : memref<1x1xf32, #tpu.memory_space<vmem>>, vector<1x1xf32>
    tpu.vector_store %arg4[%c0_17, %c0_18], %39 {strides = array<i32>} : memref<1x1xf32, #tpu.memory_space<vmem>>, vector<1x1xf32>,
    return
  }
  func.func @transform_0(%arg0: i32) -> (i32, i32) {
    %c0_i32 = arith.constant 0 : i32
    %c0_i32_0 = arith.constant 0 : i32
    return %arg0, %c0_i32 : i32, i32
  }
  func.func @transform_1(%arg0: i32) -> (i32, i32) {
    %c0_i32 = arith.constant 0 : i32
    %c0_i32_0 = arith.constant 0 : i32
    return %arg0, %c0_i32 : i32, i32
  }
  func.func @transform_2(%arg0: i32) -> (i32, i32) {
    %c0_i32 = arith.constant 0 : i32
    %c0_i32_0 = arith.constant 0 : i32
    %c0_i32_1 = arith.constant 0 : i32
    return %c0_i32, %c0_i32_0 : i32, i32
  }
  func.func @transform_3(%arg0: i32) -> (i32, i32) {
    %c0_i32 = arith.constant 0 : i32
    %c0_i32_0 = arith.constant 0 : i32
    %c0_i32_1 = arith.constant 0 : i32
    return %c0_i32, %c0_i32_0 : i32, i32
  }
}

</mosaic_0001>

<llo_original>
// kernel: tpu_custom_call.1
$region0: #{tpu_custom_call.1}
  #allocation0 [shape = 'u32[]', space=smem, size = 0x4, offset = 0x4, fixed_abs, tag = 'smem constant byte address 0x4 - core index']
  #allocation1 [shape = 'u32[72,128]{1,0:T(1,128)}', space=vmem, size = 0x9000, scoped, tag = 'internal scratch']
  %s0 = inlined_call_operand.hbm [shape: f32[64,128], index: 0, kind: input, shape index: {}]
  %s1 = inlined_call_operand.hbm [shape: f32[64,128], index: 1, kind: input, shape index: {}]
  %s2 = inlined_call_operand.vmem [shape: f32[1,128], index: 2, kind: input, shape index: {}]
  %s3 = inlined_call_operand.hbm [shape: f32[1,1], index: 3, kind: output, shape index: {}]
  %s4 = sld [smem:[#allocation0]]
  $region57: #{tpu_custom_call.1} parent=0
    _
  %s6 = ssub.s32 1, %s4
  %s7 = scalar_select 0, %s6, %s4
  $region1: #{tpu_custom_call.1} parent=0
    #allocation2 [shape = 'u8[16384]{0}', space=vmem, size = 0x4000, scoped, tag = 'input window, operand 0']
    #allocation3 [shape = 's32[2]{0}', space=sflag, size = 0x8, scoped, tag = 'scoped memory for tpu_custom_call.1']
    #allocation4 [shape = 's32[2]{0}', space=sflag, size = 0x8, scoped, tag = 'scoped memory for tpu_custom_call.1']
    #allocation5 [shape = 'u8[16384]{0}', space=vmem, size = 0x4000, scoped, tag = 'input window, operand 1']
    #allocation6 [shape = 's32[2]{0}', space=sflag, size = 0x8, scoped, tag = 'scoped memory for tpu_custom_call.1']
    #allocation7 [shape = 'u8[512]{0}', space=vmem, size = 0x400, scoped, tag = 'output window, operand 0, single buffered']
    %8 = vsyncpa [#allocation3], 0
    %s9 = scalar_lea.sflag [#allocation3], 1
    %10 = vsyncpa %s9, 0
    %11 = vsyncpa [#allocation6], 0
    %s12 = scalar_lea.sflag [#allocation6], 1
    %13 = vsyncpa %s12, 0
    %14 = vsyncpa [#allocation4], 0
    loop: start=0, step=1, limit=6
    $region2: #{tpu_custom_call.1} parent=1 // loop_pre_header
      _
    $region3: #{tpu_custom_call.1} parent=1 // loop_header
      %s16 = sphi 0, %s20
      %p17 = scmp.ge.s32.totalorder %s16, 6
      %s26 = sphi 0, %s28
      %s29 = sphi 0, %s26
      %s30 = sphi 0, %s29
      %s46 = sphi 0, %s30
      %s52 = sphi 0, %s54
      %s55 = sphi 0, %s52
      %s56 = sphi 0, %s55
      %s72 = sphi 0, %s56
      %s76 = sphi 0, %s76
      %s78 = sphi 0, %s76
      %s79 = sphi 0, %s78
      %s93 = sphi 0, %s79
      %s97 = sphi 0, %s97
      %s99 = sphi 0, %s97
      %s100 = sphi 0, %s99
      %s114 = sphi 0, %s100
    $region4: #{tpu_custom_call.1} parent=1 // loop_header_branch
      %19 = sbr.rel (%p17) target = $region8
    $region5: #{tpu_custom_call.1} parent=1 // loop_body
      %s21 = ssub.s32 %s16, 1
      %s22 = ssub.s32 %s16, 2
      %s23 = sadd.s32 %s16, 1
      %s24 = ssub.s32 %s16, %s23
      %p25 = scmp.eq.s32.totalorder %s24, 0
      %s27 = sadd.s32 %s26, 1
      %s28 = scalar_select %p25, %s26, %s27
      %p31 = pneg %p25
      %p32 = scmp.eq.s32.totalorder %s16, 3
      %p33 = por %p31, %p32
      %p34 = scmp.ne.s32.totalorder %s26, %s29
      %p35 = scmp.eq.s32.totalorder %s16, 0
      %p36 = por %p34, %p35
      %p37 = scmp.ne.s32.totalorder %s26, %s29
      %p38 = scmp.eq.s32.totalorder %s21, 3
      %p39 = por %p37, %p38
      %p40 = scmp.ne.s32.totalorder %s29, %s30
      %p41 = scmp.eq.s32.totalorder %s21, 0
      %p42 = por %p40, %p41
      %p43 = scmp.ne.s32.totalorder %s29, %s30
      %p44 = scmp.eq.s32.totalorder %s22, 3
      %p45 = por %p43, %p44
      %p47 = scmp.ne.s32.totalorder %s30, %s46
      %p48 = scmp.eq.s32.totalorder %s22, 0
      %p49 = por %p47, %p48
      %s50 = ssub.s32 %s16, %s23
      %p51 = scmp.eq.s32.totalorder %s50, 0
      %s53 = sadd.s32 %s52, 1
      %s54 = scalar_select %p51, %s52, %s53
      %p57 = pneg %p51
      %p58 = scmp.eq.s32.totalorder %s16, 3
      %p59 = por %p57, %p58
      %p60 = scmp.ne.s32.totalorder %s52, %s55
      %p61 = scmp.eq.s32.totalorder %s16, 0
      %p62 = por %p60, %p61
      %p63 = scmp.ne.s32.totalorder %s52, %s55
      %p64 = scmp.eq.s32.totalorder %s21, 3
      %p65 = por %p63, %p64
      %p66 = scmp.ne.s32.totalorder %s55, %s56
      %p67 = scmp.eq.s32.totalorder %s21, 0
      %p68 = por %p66, %p67
      %p69 = scmp.ne.s32.totalorder %s55, %s56
      %p70 = scmp.eq.s32.totalorder %s22, 3
      %p71 = por %p69, %p70
      %p73 = scmp.ne.s32.totalorder %s56, %s72
      %p74 = scmp.eq.s32.totalorder %s22, 0
      %p75 = por %p73, %p74
      %s77 = sadd.s32 %s76, 1
      %p80 = scmp.eq.s32.totalorder %s16, 3
      %p81 = scmp.ne.s32.totalorder %s76, %s78
      %p82 = scmp.eq.s32.totalorder %s16, 0
      %p83 = por %p81, %p82
      %p84 = scmp.ne.s32.totalorder %s76, %s78
      %p85 = scmp.eq.s32.totalorder %s21, 3
      %p86 = por %p84, %p85
      %p87 = scmp.ne.s32.totalorder %s78, %s79
      %p88 = scmp.eq.s32.totalorder %s21, 0
      %p89 = por %p87, %p88
      %p90 = scmp.ne.s32.totalorder %s78, %s79
      %p91 = scmp.eq.s32.totalorder %s22, 3
      %p92 = por %p90, %p91
      %p94 = scmp.ne.s32.totalorder %s79, %s93
      %p95 = scmp.eq.s32.totalorder %s22, 0
      %p96 = por %p94, %p95
      %s98 = sadd.s32 %s97, 1
      %p101 = scmp.eq.s32.totalorder %s16, 3
      %p102 = scmp.ne.s32.totalorder %s97, %s99
      %p103 = scmp.eq.s32.totalorder %s16, 0
      %p104 = por %p102, %p103
      %p105 = scmp.ne.s32.totalorder %s97, %s99
      %p106 = scmp.eq.s32.totalorder %s21, 3
      %p107 = por %p105, %p106
      %p108 = scmp.ne.s32.totalorder %s99, %s100
      %p109 = scmp.eq.s32.totalorder %s21, 0
      %p110 = por %p108, %p109
      %p111 = scmp.ne.s32.totalorder %s99, %s100
      %p112 = scmp.eq.s32.totalorder %s22, 3
      %p113 = por %p111, %p112
      %p115 = scmp.ne.s32.totalorder %s100, %s114
      %p116 = scmp.eq.s32.totalorder %s22, 0
      %p117 = por %p115, %p116
      %p118 = scmp.le.s32.totalorder 1, %s16
      %p119 = scmp.lt.s32.totalorder %s16, 5
      %p120 = pnand %p118, %p119
      %p121 = pneg %p120
      // Predicated region
      $region9: #{tpu_custom_call.1} parent=5 // pred_check
        _
      $region10: #{tpu_custom_call.1} parent=5 // pred_check_branch
        %123 = sbr.rel (%p120) target = $region12
      $region11: #{tpu_custom_call.1} parent=5 // pred_region
        %s124 = ssub.s32 %s16, 1
        // Predicated region
        $region13: #{tpu_custom_call.1} parent=11 // pred_check
          %p125 = pneg %p89
        $region14: #{tpu_custom_call.1} parent=11 // pred_check_branch
          %127 = sbr.rel (%p125) target = $region16
        $region15: #{tpu_custom_call.1} parent=11 // pred_region
          _
        $region16: #{tpu_custom_call.1} parent=11 // pred_fallthru
          _
      $region12: #{tpu_custom_call.1} parent=5 // pred_fallthru
        _
      %p128 = scmp.lt.s32.totalorder %s16, 4
      // Predicated region
      $region17: #{tpu_custom_call.1} parent=5 // pred_check
        %p129 = pneg %p128
      $region18: #{tpu_custom_call.1} parent=5 // pred_check_branch
        %131 = sbr.rel (%p129) target = $region20
      $region19: #{tpu_custom_call.1} parent=5 // pred_region
        // Predicated region
        $region21: #{tpu_custom_call.1} parent=19 // pred_check
          %p132 = pneg %p36
        $region22: #{tpu_custom_call.1} parent=19 // pred_check_branch
          %134 = sbr.rel (%p132) target = $region24
        $region23: #{tpu_custom_call.1} parent=19 // pred_region
          %s135 = sand.u32 %s26, 1
          %s136 = scalar_lea.sflag [#allocation3], %s135
          %s137 = sand.u32 %s26, 1
          %s138 = smul.addr %s137, 16
          %s139 = scalar_lea.vmem [#allocation2], %s138
          %s140 = smul.u32 2, %s16
          %142 = vsyncadd %s136, 0
          %s143 = smul.addr %s140, 8
          %s144 = scalar_lea.hbm %s0, %s143
          %s145 = sshll.u32 %s144, 4
          %s146 = int_to_ptr.hbm [resolvable:$true] %s145
          %s147 = sshll.u32 %s139, 4
          %s148 = int_to_ptr.vmem [resolvable:$true] %s147
          %153 = dma.hbm_to_vmem [thread:$0]  %s146, 256, %s148, %s136, 128, 128, 8
        $region24: #{tpu_custom_call.1} parent=19 // pred_fallthru
          _
        // Predicated region
        $region25: #{tpu_custom_call.1} parent=19 // pred_check
          %p154 = pneg %p62
        $region26: #{tpu_custom_call.1} parent=19 // pred_check_branch
          %156 = sbr.rel (%p154) target = $region28
        $region27: #{tpu_custom_call.1} parent=19 // pred_region
          %s157 = sand.u32 %s52, 1
          %s158 = scalar_lea.sflag [#allocation6], %s157
          %s159 = sand.u32 %s52, 1
          %s160 = smul.addr %s159, 16
          %s161 = scalar_lea.vmem [#allocation5], %s160
          %s162 = smul.u32 2, %s16
          %164 = vsyncadd %s158, 0
          %s165 = smul.addr %s162, 8
          %s166 = scalar_lea.hbm %s1, %s165
          %s167 = sshll.u32 %s166, 4
          %s168 = int_to_ptr.hbm [resolvable:$true] %s167
          %s169 = sshll.u32 %s161, 4
          %s170 = int_to_ptr.vmem [resolvable:$true] %s169
          %175 = dma.hbm_to_vmem [thread:$0]  %s168, 256, %s170, %s158, 128, 128, 8
        $region28: #{tpu_custom_call.1} parent=19 // pred_fallthru
          _
      $region20: #{tpu_custom_call.1} parent=5 // pred_fallthru
        _
      %p176 = scmp.le.s32.totalorder 1, %s16
      %p177 = scmp.lt.s32.totalorder %s16, 5
      %p178 = pnand %p176, %p177
      %p179 = pneg %p178
      // Predicated region
      $region29: #{tpu_custom_call.1} parent=5 // pred_check
        _
      $region30: #{tpu_custom_call.1} parent=5 // pred_check_branch
        %181 = sbr.rel (%p178) target = $region32
      $region31: #{tpu_custom_call.1} parent=5 // pred_region
        %s182 = ssub.s32 %s16, 1
        %s183 = sand.u32 %s29, 1
        %s184 = scalar_lea.sflag [#allocation3], %s183
        %s185 = sand.u32 %s29, 1
        %s186 = smul.addr %s185, 16
        %s187 = scalar_lea.vmem [#allocation2], %s186
        // Predicated region
        $region33: #{tpu_custom_call.1} parent=31 // pred_check
          %p188 = pneg %p42
        $region34: #{tpu_custom_call.1} parent=31 // pred_check_branch
          %190 = sbr.rel (%p188) target = $region36
        $region35: #{tpu_custom_call.1} parent=31 // pred_region
          %192 = dma.done %s184, 256
        $region36: #{tpu_custom_call.1} parent=31 // pred_fallthru
          _
        %s193 = sand.u32 %s55, 1
        %s194 = scalar_lea.sflag [#allocation6], %s193
        %s195 = sand.u32 %s55, 1
        %s196 = smul.addr %s195, 16
        %s197 = scalar_lea.vmem [#allocation5], %s196
        // Predicated region
        $region37: #{tpu_custom_call.1} parent=31 // pred_check
          %p198 = pneg %p68
        $region38: #{tpu_custom_call.1} parent=31 // pred_check_branch
          %200 = sbr.rel (%p198) target = $region40
        $region39: #{tpu_custom_call.1} parent=31 // pred_region
          %202 = dma.done %s194, 256
        $region40: #{tpu_custom_call.1} parent=31 // pred_fallthru
          _
        %s203 = sand.u32 %s29, 1
        %s204 = scalar_lea.sflag [#allocation3], %s203
        %s205 = sand.u32 %s29, 1
        %s206 = smul.addr %s205, 16
        %s207 = scalar_lea.vmem [#allocation2], %s206
        %p208 = pneg %p42
        %p209 = pneg %p39
        %s210 = sand.u32 %s55, 1
        %s211 = scalar_lea.sflag [#allocation6], %s210
        %s212 = sand.u32 %s55, 1
        %s213 = smul.addr %s212, 16
        %s214 = scalar_lea.vmem [#allocation5], %s213
        %p215 = pneg %p68
        %p216 = pneg %p65
        %p217 = pneg %p89
        %p218 = pneg %p86
        %p219 = pneg %p110
        %p220 = pneg %p107
        %s221 = smul.u32 2, %s21
        %s222 = smul.u32 2, %s21
        %p223 = scmp.eq.s32.totalorder %s21, 0
        // Predicated region
        $region41: #{tpu_custom_call.1} parent=31 // pred_check
          %p224 = pneg %p223
        $region42: #{tpu_custom_call.1} parent=31 // pred_check_branch
          %226 = sbr.rel (%p224) target = $region44
        $region43: #{tpu_custom_call.1} parent=31 // pred_region
          %vm227 = vcmask 0
          %228 = vst.msk [vmem:[#allocation7] sm:$0x1] %vm227, 0.0
        $region44: #{tpu_custom_call.1} parent=31 // pred_fallthru
          _
        %v229 = vld [vmem:[%s187] sm:$0xff]
        %v230 = vld [vmem:[%s187 + $0x8] sm:$0xff]
        %v231 = vld [vmem:[%s197] sm:$0xff]
        %v232 = vld [vmem:[%s197 + $0x8] sm:$0xff]
        %v233 = vld [vmem:[%s2] sm:$0x1]
        %v234 = vmul.f32 %v229, %v231
        %v235 = vmul.f32 %v230, %v232
        %236 = vadd.xlane.f32.xlu0 %v234
        %v237 = vpop.xlane.xlu0 %236
        %238 = vadd.xlane.f32.xlu0 %v235
        %v239 = vpop.xlane.xlu0 %238
        %v240 = vmul.f32 %v229, %v229
        %v241 = vmul.f32 %v230, %v230
        %242 = vadd.xlane.f32.xlu0 %v240
        %v243 = vpop.xlane.xlu0 %242
        %244 = vadd.xlane.f32.xlu0 %v241
        %v245 = vpop.xlane.xlu0 %244
        %v246 = vrsqrt.pop %v243
        %v247 = vmul.f32 %v246, %v243
        %v248 = vmul.f32 %v247, %v246
        %v249 = vmul.f32 0.5, %v248
        %v250 = vsub.f32 1.5, %v249
        %v251 = vmul.f32 %v246, %v250
        %v252 = vmul.f32 %v243, %v251
        %vm253 = vcmp.eq.f32.partialorder %v243, inf
        %v254 = vsel %vm253, %v243, %v252
        %vm255 = vcmp.eq.f32.partialorder %v243, 0.0
        %v256 = vand.u32 %v243, 2147483648
        %v257 = vsel %vm255, %v256, %v254
        %v258 = vrsqrt.pop %v245
        %v259 = vmul.f32 %v258, %v245
        %v260 = vmul.f32 %v259, %v258
        %v261 = vmul.f32 0.5, %v260
        %v262 = vsub.f32 1.5, %v261
        %v263 = vmul.f32 %v258, %v262
        %v264 = vmul.f32 %v245, %v263
        %vm265 = vcmp.eq.f32.partialorder %v245, inf
        %v266 = vsel %vm265, %v245, %v264
        %vm267 = vcmp.eq.f32.partialorder %v245, 0.0
        %v268 = vand.u32 %v245, 2147483648
        %v269 = vsel %vm267, %v268, %v266
        %v270 = vmul.f32 %v231, %v231
        %v271 = vmul.f32 %v232, %v232
        %272 = vadd.xlane.f32.xlu0 %v270
        %v273 = vpop.xlane.xlu0 %272
        %274 = vadd.xlane.f32.xlu0 %v271
        %v275 = vpop.xlane.xlu0 %274
        %v276 = vrsqrt.pop %v273
        %v277 = vmul.f32 %v276, %v273
        %v278 = vmul.f32 %v277, %v276
        %v279 = vmul.f32 0.5, %v278
        %v280 = vsub.f32 1.5, %v279
        %v281 = vmul.f32 %v276, %v280
        %v282 = vmul.f32 %v273, %v281
        %vm283 = vcmp.eq.f32.partialorder %v273, inf
        %v284 = vsel %vm283, %v273, %v282
        %vm285 = vcmp.eq.f32.partialorder %v273, 0.0
        %v286 = vand.u32 %v273, 2147483648
        %v287 = vsel %vm285, %v286, %v284
        %v288 = vrsqrt.pop %v275
        %v289 = vmul.f32 %v288, %v275
        %v290 = vmul.f32 %v289, %v288
        %v291 = vmul.f32 0.5, %v290
        %v292 = vsub.f32 1.5, %v291
        %v293 = vmul.f32 %v288, %v292
        %v294 = vmul.f32 %v275, %v293
        %vm295 = vcmp.eq.f32.partialorder %v275, inf
        %v296 = vsel %vm295, %v275, %v294
        %vm297 = vcmp.eq.f32.partialorder %v275, 0.0
        %v298 = vand.u32 %v275, 2147483648
        %v299 = vsel %vm297, %v298, %v296
        %v300 = vmul.f32 %v257, %v287
        %v301 = vmul.f32 %v269, %v299
        %v302 = vmax.f32 %v300, 1e-08
        %v303 = vmax.f32 %v301, 1e-08
        %v304 = vrcp.pop %v302
        %v305 = vmul.f32 %v302, %v304
        %v306 = vsub.f32 1.0, %v305
        %v307 = vmul.f32 %v304, %v306
        %v308 = vadd.f32 %v304, %v307
        %vm309 = vweird.f32 %v302
        %vm310 = vweird.f32 %v304
        %vm311 = vmor %vm309, %vm310
        %v312 = vsel %vm311, %v304, %v308
        %v313 = vand.u32 2147483647, %v302
        %vm314 = vcmp.eq.f32.partialorder %v313, 8.507059e+37
        %v315 = vand.u32 %v302, 2147483648
        %v316 = vor.u32 1.1754944e-38, %v315
        %v317 = vsel %vm314, %v316, %v312
        %v318 = vmul.f32 %v237, %v317
        %v319 = vrcp.pop %v303
        %v320 = vmul.f32 %v303, %v319
        %v321 = vsub.f32 1.0, %v320
        %v322 = vmul.f32 %v319, %v321
        %v323 = vadd.f32 %v319, %v322
        %vm324 = vweird.f32 %v303
        %vm325 = vweird.f32 %v319
        %vm326 = vmor %vm324, %vm325
        %v327 = vsel %vm326, %v319, %v323
        %v328 = vand.u32 2147483647, %v303
        %vm329 = vcmp.eq.f32.partialorder %v328, 8.507059e+37
        %v330 = vand.u32 %v303, 2147483648
        %v331 = vor.u32 1.1754944e-38, %v330
        %v332 = vsel %vm329, %v331, %v327
        %v333 = vmul.f32 %v239, %v332
        %v334 = vsub.f32 1.0, %v318
        %v335 = vsub.f32 1.0, %v333
        %v336 = vmul.f32 %v334, 0.03125
        %v337 = vmul.f32 %v335, 0.03125
        %v338 = vadd.f32 %v336, %v337
        %v339 = vrot.slane %v338, 4
        %v340 = vadd.f32 %v338, %v339
        %v341 = vrot.slane %v340, 2
        %v342 = vadd.f32 %v340, %v341
        %v343 = vrot.slane %v342, 1
        %v344 = vadd.f32 %v342, %v343
        %v345 = vsub.f32 %v229, %v231
        %v346 = vsub.f32 %v230, %v232
        %v347 = vmul.f32 %v345, %v345
        %v348 = vmul.f32 %v346, %v346
        %v350 = vperm.slane %v233, 0
        %v352 = vmul.f32 %v347, %v350
        %v353 = vmul.f32 %v348, %v350
        %354 = vadd.xlane.f32.xlu0 %v352
        %v355 = vpop.xlane.xlu0 %354
        %356 = vadd.xlane.f32.xlu0 %v353
        %v357 = vpop.xlane.xlu0 %356
        %v358 = vadd.f32 %v355, %v357
        %v359 = vrot.slane %v358, 4
        %v360 = vadd.f32 %v358, %v359
        %v361 = vrot.slane %v360, 2
        %v362 = vadd.f32 %v360, %v361
        %v363 = vrot.slane %v362, 1
        %v364 = vadd.f32 %v362, %v363
        %v365 = vmul.f32 %v364, 0.00012207031
        %v366 = vld [vmem:[#allocation7] sm:$0x1]
        %v367 = vadd.f32 %v344, %v365
        %v368 = vadd.f32 %v366, %v367
        %vm369 = vcmask 0
        %370 = vst.msk [vmem:[#allocation7] sm:$0x1] %vm369, %v368
        // Predicated region
        $region45: #{tpu_custom_call.1} parent=31 // pred_check
          %p371 = pneg %p107
        $region46: #{tpu_custom_call.1} parent=31 // pred_check_branch
          %373 = sbr.rel (%p371) target = $region48
        $region47: #{tpu_custom_call.1} parent=31 // pred_region
          %375 = vsyncadd [#allocation4], 0
          %s377 = sshll.u32 [#allocation7], 4
          %s378 = int_to_ptr.vmem [resolvable:$true] %s377
          %s379 = sshll.u32 %s3, 4
          %s380 = int_to_ptr.hbm [resolvable:$true] %s379
          %382 = dma.vmem_to_hbm [thread:$0]  %s378, 16, %s380, [#allocation4]
        $region48: #{tpu_custom_call.1} parent=31 // pred_fallthru
          _
        // Predicated region
        $region49: #{tpu_custom_call.1} parent=31 // pred_check
          %p383 = pneg %p107
        $region50: #{tpu_custom_call.1} parent=31 // pred_check_branch
          %385 = sbr.rel (%p383) target = $region52
        $region51: #{tpu_custom_call.1} parent=31 // pred_region
          %387 = dma.done [#allocation4], 16
        $region52: #{tpu_custom_call.1} parent=31 // pred_fallthru
          _
      $region32: #{tpu_custom_call.1} parent=5 // pred_fallthru
        _
      %p388 = scmp.le.s32.totalorder 2, %s16
      // Predicated region
      $region53: #{tpu_custom_call.1} parent=5 // pred_check
        %p389 = pneg %p388
      $region54: #{tpu_custom_call.1} parent=5 // pred_check_branch
        %391 = sbr.rel (%p389) target = $region56
      $region55: #{tpu_custom_call.1} parent=5 // pred_region
        %s392 = ssub.s32 %s16, 2
      $region56: #{tpu_custom_call.1} parent=5 // pred_fallthru
        _
    $region6: #{tpu_custom_call.1} parent=1 // loop_footer
      %s20 = sadd.s32 1, %s16
    $region7: #{tpu_custom_call.1} parent=1 // loop_footer_branch
      %15 = sbr.rel target = $region3
    $region8: #{tpu_custom_call.1} parent=1 // loop_exit
      _
    %393 = vsyncpa [#allocation3], 1
    %s394 = scalar_lea.sflag [#allocation3], 1
    %395 = vsyncpa %s394, 1
    %396 = vsyncpa [#allocation6], 1
    %s397 = scalar_lea.sflag [#allocation6], 1
    %398 = vsyncpa %s397, 1
    %399 = vsyncpa [#allocation4], 1
    %s400 = scalar_lea.sflag [#allocation4], 1
    %401 = vsyncpa %s400, 1

</llo_original>
